<compile_context>
chip_gen: v6e
topology: v6e:2x2x1
jax: 0.10.0
libtpu: 0.0.40
codegen_flags: <defaults>
</compile_context>

<pallas_src>
import functools

import jax
import jax.numpy as jnp
from jax import lax
from jax.experimental import pallas as pl
from jax.experimental.pallas import tpu as pltpu


def lstm_fc_sigmoid_kernel(x_ref, wih_ref, whh_ref, b_ref, wfc_ref, bfc_ref,
                           out_ref, *, seq_len):
    """Whole LSTM + final Linear + sigmoid in one (gridless) kernel invocation.

    x_ref:   (T*B, I)   time-major flattened input
    wih_ref: (I, 4H)    input->gate weights  (PyTorch weight_ih_l0.T)
    whh_ref: (H, 4H)    hidden->gate weights (PyTorch weight_hh_l0.T)
    b_ref:   (1, 4H)    bias_ih + bias_hh
    wfc_ref: (H, O)     final Linear weight  (fc.weight.T)
    bfc_ref: (1, O)     final Linear bias
    out_ref: (B, O)     sigmoid(fc(h_T))
    """
    T = seq_len
    TB = x_ref.shape[0]
    B = TB // T
    H = whh_ref.shape[0]

    def sigmoid(z):
        # Exact identity: one EUP (tanh) push, no exp + divide.
        return 0.5 * jnp.tanh(0.5 * z) + 0.5

    # Hoisted non-recurrent projection + bias: one (T*B, I) x (I, 4H) matmul
    # off the serial path; result (~8 vregs) stays live for the recurrence.
    xproj = (jnp.dot(x_ref[...], wih_ref[...],
                     preferred_element_type=jnp.float32) + b_ref[...])

    # Loop-invariant recurrent weights: loaded once (16 vregs at H=32) so they
    # stay resident across the unrolled serial recurrence instead of being
    # re-read from VMEM every step.
    whh = whh_ref[...]

    h = jnp.zeros((B, H), jnp.float32)
    c = jnp.zeros((B, H), jnp.float32)

    # T is small and static -> fully unrolled serial recurrence (gives the
    # LLO scheduler cross-timestep visibility).  Per-step critical path is
    # only (B,H)x(H,4H) on the MXU plus whole-vreg gate math.
    for t in range(T):
        gates = xproj[t * B:(t + 1) * B, :] + jnp.dot(
            h, whh, preferred_element_type=jnp.float32)      # (B, 4H)
        # PyTorch LSTM gate order along the 4H lanes: input, forget, cell(g),
        # output.  One sigmoid pass covers the i/f/o blocks (g lanes unused).
        s = sigmoid(gates)
        i_g = s[:, 0 * H:1 * H]
        f_g = s[:, 1 * H:2 * H]
        g_g = jnp.tanh(gates[:, 2 * H:3 * H])
        o_g = s[:, 3 * H:4 * H]
        c = f_g * c + i_g * g_g
        h = o_g * jnp.tanh(c)

    logits = (jnp.dot(h, wfc_ref[...], preferred_element_type=jnp.float32)
              + bfc_ref[...])
    # (B, O) with O=8 is a lane-sparse masked store; negligible at this size.
    out_ref[...] = sigmoid(logits).astype(out_ref.dtype)


@jax.jit
def teacher_model_forward(x_btI, wih, whh, b, wfc, bfc):
    """x_btI: (B, T, I) batch-first, like the PyTorch module.

    wih: (I, 4H) = weight_ih_l0.T      whh: (H, 4H) = weight_hh_l0.T
    b:   (1, 4H) = bias_ih_l0 + bias_hh_l0
    wfc: (H, O)  = fc.weight.T         bfc: (1, O)  = fc.bias

    Weights are consumed in their natural layouts -- no per-call padding or
    reshape HLOs.  The only per-call prep op is the (4 KiB) time-major
    transpose of x, which the review flagged as acceptable to keep.
    """
    B, T, I = x_btI.shape
    O = wfc.shape[1]

    x_tbi = jnp.transpose(x_btI, (1, 0, 2)).reshape(T * B, I)

    vmem = pl.BlockSpec(memory_space=pltpu.MemorySpace.VMEM)
    kernel = functools.partial(lstm_fc_sigmoid_kernel, seq_len=T)

    # Total footprint (x + weights + activations) is ~50 KiB: gridless single
    # invocation, no pipelining or vmem_limit tuning needed on v5e/v6e/v7x.
    return pl.pallas_call(
        kernel,
        out_shape=jax.ShapeDtypeStruct((B, O), jnp.float32),
        in_specs=[vmem] * 6,
        out_specs=vmem,
    )(x_tbi, wih, whh, b, wfc, bfc)


def reference_forward(x_btI, wih, whh, b, wfc, bfc):
    """Pure-JAX reference replicating nn.LSTM(batch_first=True) + Linear + sigmoid."""
    B, T, I = x_btI.shape
    H = whh.shape[0]

    def step(carry, x_t):
        h, c = carry
        gates = x_t @ wih + h @ whh + b[0]
        i_g = jax.nn.sigmoid(gates[:, 0 * H:1 * H])
        f_g = jax.nn.sigmoid(gates[:, 1 * H:2 * H])
        g_g = jnp.tanh(gates[:, 2 * H:3 * H])
        o_g = jax.nn.sigmoid(gates[:, 3 * H:4 * H])
        c = f_g * c + i_g * g_g
        h = o_g * jnp.tanh(c)
        return (h, c), None

    h0 = jnp.zeros((B, H), jnp.float32)
    c0 = jnp.zeros((B, H), jnp.float32)
    (hT, _), _ = lax.scan(step, (h0, c0), jnp.transpose(x_btI, (1, 0, 2)))
    return jax.nn.sigmoid(hT @ wfc + bfc[0])


if __name__ == "__main__":
    # LSTM(input_size=16, hidden_size=32) + Linear(32, 8), batch=8, seq=8.
    B, T, I, H, O = 8, 8, 16, 32, 8

    key = jax.random.PRNGKey(0)
    ks = jax.random.split(key, 7)
    bound = 1.0 / jnp.sqrt(H)  # PyTorch default uniform init bound

    x = jax.random.normal(ks[0], (B, T, I), dtype=jnp.float32)

    # PyTorch stores weight_ih_l0 (4H, I), weight_hh_l0 (4H, H); kept transposed.
    wih = jax.random.uniform(ks[1], (I, 4 * H), jnp.float32, -bound, bound)
    whh = jax.random.uniform(ks[2], (H, 4 * H), jnp.float32, -bound, bound)
    bias_ih = jax.random.uniform(ks[3], (4 * H,), jnp.float32, -bound, bound)
    bias_hh = jax.random.uniform(ks[4], (4 * H,), jnp.float32, -bound, bound)
    b = (bias_ih + bias_hh).reshape(1, 4 * H)

    # fc: Linear(hidden_size, output_size); PyTorch weight (O, H) -> transposed.
    wfc = jax.random.uniform(ks[5], (H, O), jnp.float32, -bound, bound)
    bfc = jax.random.uniform(ks[6], (1, O), jnp.float32, -bound, bound)

    out = teacher_model_forward(x, wih, whh, b, wfc, bfc)
    out = jax.block_until_ready(out)

    ref = reference_forward(x, wih, whh, b, wfc, bfc)
    assert out.shape == (B, O)
    # Kernel sigmoid uses the exact 0.5*tanh(0.5x)+0.5 identity; it agrees with
    # jax.nn.sigmoid to ~1e-7, so a small margin over 1e-5 is kept.
    assert jnp.allclose(out, ref, atol=2e-5, rtol=2e-5)

    print("KERNEL_OK")
</pallas_src>

<mosaic_0001>
module attributes {stable_mosaic.version = 11 : i64} {
  func.func @lstm_fc_sigmoid_kernel(%arg0: memref<64x16xf32, #tpu.memory_space<vmem>>, %arg1: memref<16x128xf32, #tpu.memory_space<vmem>>, %arg2: memref<32x128xf32, #tpu.memory_space<vmem>>, %arg3: memref<1x128xf32, #tpu.memory_space<vmem>>, %arg4: memref<32x8xf32, #tpu.memory_space<vmem>>, %arg5: memref<1x8xf32, #tpu.memory_space<vmem>>, %arg6: memref<8x8xf32, #tpu.memory_space<vmem>>) attributes {dimension_semantics = [], scalar_prefetch = 0 : i64, scratch_operands = 0 : i64, tpu.core_type = #tpu.core_type<tc>} {
    %c0 = arith.constant 0 : index
    %c0_0 = arith.constant 0 : index
    %0 = vector.load %arg0[%c0, %c0_0] : memref<64x16xf32, #tpu.memory_space<vmem>>, vector<64x16xf32>
    %c0_1 = arith.constant 0 : index
    %c0_2 = arith.constant 0 : index
    %1 = vector.load %arg1[%c0_1, %c0_2] : memref<16x128xf32, #tpu.memory_space<vmem>>, vector<16x128xf32>
    %cst = arith.constant dense<0.000000e+00> : vector<64x128xf32>
    %2 = tpu.matmul %0, %1, %cst {dimension_numbers = #tpu.dot_dimension_numbers<[1], [0], [0], [1], [0, 0, 1, 1], [], []>} : vector<64x16xf32>, vector<16x128xf32>, vector<64x128xf32> -> vector<64x128xf32>
    %c0_3 = arith.constant 0 : index
    %c0_4 = arith.constant 0 : index
    %3 = vector.load %arg3[%c0_3, %c0_4] : memref<1x128xf32, #tpu.memory_space<vmem>>, vector<1x128xf32>
    %4 = vector.broadcast %3 : vector<1x128xf32> to vector<64x128xf32>
    %5 = arith.addf %2, %4 : vector<64x128xf32>
    %c0_5 = arith.constant 0 : index
    %c0_6 = arith.constant 0 : index
    %6 = vector.load %arg2[%c0_5, %c0_6] : memref<32x128xf32, #tpu.memory_space<vmem>>, vector<32x128xf32>
    %cst_7 = arith.constant 0.000000e+00 : f32
    %7 = vector.broadcast %cst_7 : f32 to vector<8x32xf32>
    %cst_8 = arith.constant 0.000000e+00 : f32
    %8 = vector.broadcast %cst_8 : f32 to vector<8x32xf32>
    %9 = vector.extract_strided_slice %5 {offsets = [0, 0], sizes = [8, 128], strides = [1, 1]} : vector<64x128xf32> to vector<8x128xf32>
    %cst_9 = arith.constant dense<0.000000e+00> : vector<8x128xf32>
    %10 = tpu.matmul %7, %6, %cst_9 {dimension_numbers = #tpu.dot_dimension_numbers<[1], [0], [0], [1], [0, 0, 1, 1], [], []>} : vector<8x32xf32>, vector<32x128xf32>, vector<8x128xf32> -> vector<8x128xf32>
    %11 = arith.addf %9, %10 : vector<8x128xf32>
    %cst_10 = arith.constant 5.000000e-01 : f32
    %12 = vector.broadcast %cst_10 : f32 to vector<8x128xf32>
    %13 = arith.mulf %12, %11 : vector<8x128xf32>
    %14 = math.tanh %13 : vector<8x128xf32>
    %cst_11 = arith.constant 5.000000e-01 : f32
    %15 = vector.broadcast %cst_11 : f32 to vector<8x128xf32>
    %16 = arith.mulf %15, %14 : vector<8x128xf32>
    %cst_12 = arith.constant 5.000000e-01 : f32
    %17 = vector.broadcast %cst_12 : f32 to vector<8x128xf32>
    %18 = arith.addf %16, %17 : vector<8x128xf32>
    %19 = vector.extract_strided_slice %18 {offsets = [0, 0], sizes = [8, 32], strides = [1, 1]} : vector<8x128xf32> to vector<8x32xf32>
    %20 = vector.extract_strided_slice %18 {offsets = [0, 32], sizes = [8, 32], strides = [1, 1]} : vector<8x128xf32> to vector<8x32xf32>
    %21 = vector.extract_strided_slice %11 {offsets = [0, 64], sizes = [8, 32], strides = [1, 1]} : vector<8x128xf32> to vector<8x32xf32>
    %22 = math.tanh %21 : vector<8x32xf32>
    %23 = vector.extract_strided_slice %18 {offsets = [0, 96], sizes = [8, 32], strides = [1, 1]} : vector<8x128xf32> to vector<8x32xf32>
    %24 = arith.mulf %20, %8 : vector<8x32xf32>
    %25 = arith.mulf %19, %22 : vector<8x32xf32>
    %26 = arith.addf %24, %25 : vector<8x32xf32>
    %27 = math.tanh %26 : vector<8x32xf32>
    %28 = arith.mulf %23, %27 : vector<8x32xf32>
    %29 = vector.extract_strided_slice %5 {offsets = [8, 0], sizes = [8, 128], strides = [1, 1]} : vector<64x128xf32> to vector<8x128xf32>
    %cst_13 = arith.constant dense<0.000000e+00> : vector<8x128xf32>
    %30 = tpu.matmul %28, %6, %cst_13 {dimension_numbers = #tpu.dot_dimension_numbers<[1], [0], [0], [1], [0, 0, 1, 1], [], []>} : vector<8x32xf32>, vector<32x128xf32>, vector<8x128xf32> -> vector<8x128xf32>
    %31 = arith.addf %29, %30 : vector<8x128xf32>
    %cst_14 = arith.constant 5.000000e-01 : f32
    %32 = vector.broadcast %cst_14 : f32 to vector<8x128xf32>
    %33 = arith.mulf %32, %31 : vector<8x128xf32>
    %34 = math.tanh %33 : vector<8x128xf32>
    %cst_15 = arith.constant 5.000000e-01 : f32
    %35 = vector.broadcast %cst_15 : f32 to vector<8x128xf32>
    %36 = arith.mulf %35, %34 : vector<8x128xf32>
    %cst_16 = arith.constant 5.000000e-01 : f32
    %37 = vector.broadcast %cst_16 : f32 to vector<8x128xf32>
    %38 = arith.addf %36, %37 : vector<8x128xf32>
    %39 = vector.extract_strided_slice %38 {offsets = [0, 0], sizes = [8, 32], strides = [1, 1]} : vector<8x128xf32> to vector<8x32xf32>
    %40 = vector.extract_strided_slice %38 {offsets = [0, 32], sizes = [8, 32], strides = [1, 1]} : vector<8x128xf32> to vector<8x32xf32>
    %41 = vector.extract_strided_slice %31 {offsets = [0, 64], sizes = [8, 32], strides = [1, 1]} : vector<8x128xf32> to vector<8x32xf32>
    %42 = math.tanh %41 : vector<8x32xf32>
    %43 = vector.extract_strided_slice %38 {offsets = [0, 96], sizes = [8, 32], strides = [1, 1]} : vector<8x128xf32> to vector<8x32xf32>
    %44 = arith.mulf %40, %26 : vector<8x32xf32>
    %45 = arith.mulf %39, %42 : vector<8x32xf32>
    %46 = arith.addf %44, %45 : vector<8x32xf32>
    %47 = math.tanh %46 : vector<8x32xf32>
    %48 = arith.mulf %43, %47 : vector<8x32xf32>
    %49 = vector.extract_strided_slice %5 {offsets = [16, 0], sizes = [8, 128], strides = [1, 1]} : vector<64x128xf32> to vector<8x128xf32>
    %cst_17 = arith.constant dense<0.000000e+00> : vector<8x128xf32>
    %50 = tpu.matmul %48, %6, %cst_17 {dimension_numbers = #tpu.dot_dimension_numbers<[1], [0], [0], [1], [0, 0, 1, 1], [], []>} : vector<8x32xf32>, vector<32x128xf32>, vector<8x128xf32> -> vector<8x128xf32>
    %51 = arith.addf %49, %50 : vector<8x128xf32>
    %cst_18 = arith.constant 5.000000e-01 : f32
    %52 = vector.broadcast %cst_18 : f32 to vector<8x128xf32>
    %53 = arith.mulf %52, %51 : vector<8x128xf32>
    %54 = math.tanh %53 : vector<8x128xf32>
    %cst_19 = arith.constant 5.000000e-01 : f32
    %55 = vector.broadcast %cst_19 : f32 to vector<8x128xf32>
    %56 = arith.mulf %55, %54 : vector<8x128xf32>
    %cst_20 = arith.constant 5.000000e-01 : f32
    %57 = vector.broadcast %cst_20 : f32 to vector<8x128xf32>
    %58 = arith.addf %56, %57 : vector<8x128xf32>
    %59 = vector.extract_strided_slice %58 {offsets = [0, 0], sizes = [8, 32], strides = [1, 1]} : vector<8x128xf32> to vector<8x32xf32>
    %60 = vector.extract_strided_slice %58 {offsets = [0, 32], sizes = [8, 32], strides = [1, 1]} : vector<8x128xf32> to vector<8x32xf32>
    %61 = vector.extract_strided_slice %51 {offsets = [0, 64], sizes = [8, 32], strides = [1, 1]} : vector<8x128xf32> to vector<8x32xf32>
    %62 = math.tanh %61 : vector<8x32xf32>
    %63 = vector.extract_strided_slice %58 {offsets = [0, 96], sizes = [8, 32], strides = [1, 1]} : vector<8x128xf32> to vector<8x32xf32>
    %64 = arith.mulf %60, %46 : vector<8x32xf32>
    %65 = arith.mulf %59, %62 : vector<8x32xf32>
    %66 = arith.addf %64, %65 : vector<8x32xf32>
    %67 = math.tanh %66 : vector<8x32xf32>
    %68 = arith.mulf %63, %67 : vector<8x32xf32>
    %69 = vector.extract_strided_slice %5 {offsets = [24, 0], sizes = [8, 128], strides = [1, 1]} : vector<64x128xf32> to vector<8x128xf32>
    %cst_21 = arith.constant dense<0.000000e+00> : vector<8x128xf32>
    %70 = tpu.matmul %68, %6, %cst_21 {dimension_numbers = #tpu.dot_dimension_numbers<[1], [0], [0], [1], [0, 0, 1, 1], [], []>} : vector<8x32xf32>, vector<32x128xf32>, vector<8x128xf32> -> vector<8x128xf32>
    %71 = arith.addf %69, %70 : vector<8x128xf32>
    %cst_22 = arith.constant 5.000000e-01 : f32
    %72 = vector.broadcast %cst_22 : f32 to vector<8x128xf32>
    %73 = arith.mulf %72, %71 : vector<8x128xf32>
    %74 = math.tanh %73 : vector<8x128xf32>
    %cst_23 = arith.constant 5.000000e-01 : f32
    %75 = vector.broadcast %cst_23 : f32 to vector<8x128xf32>
    %76 = arith.mulf %75, %74 : vector<8x128xf32>
    %cst_24 = arith.constant 5.000000e-01 : f32
    %77 = vector.broadcast %cst_24 : f32 to vector<8x128xf32>
    %78 = arith.addf %76, %77 : vector<8x128xf32>
    %79 = vector.extract_strided_slice %78 {offsets = [0, 0], sizes = [8, 32], strides = [1, 1]} : vector<8x128xf32> to vector<8x32xf32>
    %80 = vector.extract_strided_slice %78 {offsets = [0, 32], sizes = [8, 32], strides = [1, 1]} : vector<8x128xf32> to vector<8x32xf32>
    %81 = vector.extract_strided_slice %71 {offsets = [0, 64], sizes = [8, 32], strides = [1, 1]} : vector<8x128xf32> to vector<8x32xf32>
    %82 = math.tanh %81 : vector<8x32xf32>
    %83 = vector.extract_strided_slice %78 {offsets = [0, 96], sizes = [8, 32], strides = [1, 1]} : vector<8x128xf32> to vector<8x32xf32>
    %84 = arith.mulf %80, %66 : vector<8x32xf32>
    %85 = arith.mulf %79, %82 : vector<8x32xf32>
    %86 = arith.addf %84, %85 : vector<8x32xf32>
    %87 = math.tanh %86 : vector<8x32xf32>
    %88 = arith.mulf %83, %87 : vector<8x32xf32>
    %89 = vector.extract_strided_slice %5 {offsets = [32, 0], sizes = [8, 128], strides = [1, 1]} : vector<64x128xf32> to vector<8x128xf32>
    %cst_25 = arith.constant dense<0.000000e+00> : vector<8x128xf32>
    %90 = tpu.matmul %88, %6, %cst_25 {dimension_numbers = #tpu.dot_dimension_numbers<[1], [0], [0], [1], [0, 0, 1, 1], [], []>} : vector<8x32xf32>, vector<32x128xf32>, vector<8x128xf32> -> vector<8x128xf32>
    %91 = arith.addf %89, %90 : vector<8x128xf32>
    %cst_26 = arith.constant 5.000000e-01 : f32
    %92 = vector.broadcast %cst_26 : f32 to vector<8x128xf32>
    %93 = arith.mulf %92, %91 : vector<8x128xf32>
    %94 = math.tanh %93 : vector<8x128xf32>
    %cst_27 = arith.constant 5.000000e-01 : f32
    %95 = vector.broadcast %cst_27 : f32 to vector<8x128xf32>
    %96 = arith.mulf %95, %94 : vector<8x128xf32>
    %cst_28 = arith.constant 5.000000e-01 : f32
    %97 = vector.broadcast %cst_28 : f32 to vector<8x128xf32>
    %98 = arith.addf %96, %97 : vector<8x128xf32>
    %99 = vector.extract_strided_slice %98 {offsets = [0, 0], sizes = [8, 32], strides = [1, 1]} : vector<8x128xf32> to vector<8x32xf32>
    %100 = vector.extract_strided_slice %98 {offsets = [0, 32], sizes = [8, 32], strides = [1, 1]} : vector<8x128xf32> to vector<8x32xf32>
    %101 = vector.extract_strided_slice %91 {offsets = [0, 64], sizes = [8, 32], strides = [1, 1]} : vector<8x128xf32> to vector<8x32xf32>
    %102 = math.tanh %101 : vector<8x32xf32>
    %103 = vector.extract_strided_slice %98 {offsets = [0, 96], sizes = [8, 32], strides = [1, 1]} : vector<8x128xf32> to vector<8x32xf32>
    %104 = arith.mulf %100, %86 : vector<8x32xf32>
    %105 = arith.mulf %99, %102 : vector<8x32xf32>
    %106 = arith.addf %104, %105 : vector<8x32xf32>
    %107 = math.tanh %106 : vector<8x32xf32>
    %108 = arith.mulf %103, %107 : vector<8x32xf32>
    %109 = vector.extract_strided_slice %5 {offsets = [40, 0], sizes = [8, 128], strides = [1, 1]} : vector<64x128xf32> to vector<8x128xf32>
    %cst_29 = arith.constant dense<0.000000e+00> : vector<8x128xf32>
    %110 = tpu.matmul %108, %6, %cst_29 {dimension_numbers = #tpu.dot_dimension_numbers<[1], [0], [0], [1], [0, 0, 1, 1], [], []>} : vector<8x32xf32>, vector<32x128xf32>, vector<8x128xf32> -> vector<8x128xf32>
    %111 = arith.addf %109, %110 : vector<8x128xf32>
    %cst_30 = arith.constant 5.000000e-01 : f32
    %112 = vector.broadcast %cst_30 : f32 to vector<8x128xf32>
    %113 = arith.mulf %112, %111 : vector<8x128xf32>
    %114 = math.tanh %113 : vector<8x128xf32>
    %cst_31 = arith.constant 5.000000e-01 : f32
    %115 = vector.broadcast %cst_31 : f32 to vector<8x128xf32>
    %116 = arith.mulf %115, %114 : vector<8x128xf32>
    %cst_32 = arith.constant 5.000000e-01 : f32
    %117 = vector.broadcast %cst_32 : f32 to vector<8x128xf32>
    %118 = arith.addf %116, %117 : vector<8x128xf32>
    %119 = vector.extract_strided_slice %118 {offsets = [0, 0], sizes = [8, 32], strides = [1, 1]} : vector<8x128xf32> to vector<8x32xf32>
    %120 = vector.extract_strided_slice %118 {offsets = [0, 32], sizes = [8, 32], strides = [1, 1]} : vector<8x128xf32> to vector<8x32xf32>
    %121 = vector.extract_strided_slice %111 {offsets = [0, 64], sizes = [8, 32], strides = [1, 1]} : vector<8x128xf32> to vector<8x32xf32>
    %122 = math.tanh %121 : vector<8x32xf32>
    %123 = vector.extract_strided_slice %118 {offsets = [0, 96], sizes = [8, 32], strides = [1, 1]} : vector<8x128xf32> to vector<8x32xf32>
    %124 = arith.mulf %120, %106 : vector<8x32xf32>
    %125 = arith.mulf %119, %122 : vector<8x32xf32>
    %126 = arith.addf %124, %125 : vector<8x32xf32>
    %127 = math.tanh %126 : vector<8x32xf32>
    %128 = arith.mulf %123, %127 : vector<8x32xf32>
    %129 = vector.extract_strided_slice %5 {offsets = [48, 0], sizes = [8, 128], strides = [1, 1]} : vector<64x128xf32> to vector<8x128xf32>
    %cst_33 = arith.constant dense<0.000000e+00> : vector<8x128xf32>
    %130 = tpu.matmul %128, %6, %cst_33 {dimension_numbers = #tpu.dot_dimension_numbers<[1], [0], [0], [1], [0, 0, 1, 1], [], []>} : vector<8x32xf32>, vector<32x128xf32>, vector<8x128xf32> -> vector<8x128xf32>
    %131 = arith.addf %129, %130 : vector<8x128xf32>
    %cst_34 = arith.constant 5.000000e-01 : f32
    %132 = vector.broadcast %cst_34 : f32 to vector<8x128xf32>
    %133 = arith.mulf %132, %131 : vector<8x128xf32>
    %134 = math.tanh %133 : vector<8x128xf32>
    %cst_35 = arith.constant 5.000000e-01 : f32
    %135 = vector.broadcast %cst_35 : f32 to vector<8x128xf32>
    %136 = arith.mulf %135, %134 : vector<8x128xf32>
    %cst_36 = arith.constant 5.000000e-01 : f32
    %137 = vector.broadcast %cst_36 : f32 to vector<8x128xf32>
    %138 = arith.addf %136, %137 : vector<8x128xf32>
    %139 = vector.extract_strided_slice %138 {offsets = [0, 0], sizes = [8, 32], strides = [1, 1]} : vector<8x128xf32> to vector<8x32xf32>
    %140 = vector.extract_strided_slice %138 {offsets = [0, 32], sizes = [8, 32], strides = [1, 1]} : vector<8x128xf32> to vector<8x32xf32>
    %141 = vector.extract_strided_slice %131 {offsets = [0, 64], sizes = [8, 32], strides = [1, 1]} : vector<8x128xf32> to vector<8x32xf32>
    %142 = math.tanh %141 : vector<8x32xf32>
    %143 = vector.extract_strided_slice %138 {offsets = [0, 96], sizes = [8, 32], strides = [1, 1]} : vector<8x128xf32> to vector<8x32xf32>
    %144 = arith.mulf %140, %126 : vector<8x32xf32>
    %145 = arith.mulf %139, %142 : vector<8x32xf32>
    %146 = arith.addf %144, %145 : vector<8x32xf32>
    %147 = math.tanh %146 : vector<8x32xf32>
    %148 = arith.mulf %143, %147 : vector<8x32xf32>
    %149 = vector.extract_strided_slice %5 {offsets = [56, 0], sizes = [8, 128], strides = [1, 1]} : vector<64x128xf32> to vector<8x128xf32>
    %cst_37 = arith.constant dense<0.000000e+00> : vector<8x128xf32>
    %150 = tpu.matmul %148, %6, %cst_37 {dimension_numbers = #tpu.dot_dimension_numbers<[1], [0], [0], [1], [0, 0, 1, 1], [], []>} : vector<8x32xf32>, vector<32x128xf32>, vector<8x128xf32> -> vector<8x128xf32>
    %151 = arith.addf %149, %150 : vector<8x128xf32>
    %cst_38 = arith.constant 5.000000e-01 : f32
    %152 = vector.broadcast %cst_38 : f32 to vector<8x128xf32>
    %153 = arith.mulf %152, %151 : vector<8x128xf32>
    %154 = math.tanh %153 : vector<8x128xf32>
    %cst_39 = arith.constant 5.000000e-01 : f32
    %155 = vector.broadcast %cst_39 : f32 to vector<8x128xf32>
    %156 = arith.mulf %155, %154 : vector<8x128xf32>
    %cst_40 = arith.constant 5.000000e-01 : f32
    %157 = vector.broadcast %cst_40 : f32 to vector<8x128xf32>
    %158 = arith.addf %156, %157 : vector<8x128xf32>
    %159 = vector.extract_strided_slice %158 {offsets = [0, 0], sizes = [8, 32], strides = [1, 1]} : vector<8x128xf32> to vector<8x32xf32>
    %160 = vector.extract_strided_slice %158 {offsets = [0, 32], sizes = [8, 32], strides = [1, 1]} : vector<8x128xf32> to vector<8x32xf32>
    %161 = vector.extract_strided_slice %151 {offsets = [0, 64], sizes = [8, 32], strides = [1, 1]} : vector<8x128xf32> to vector<8x32xf32>
    %162 = math.tanh %161 : vector<8x32xf32>
    %163 = vector.extract_strided_slice %158 {offsets = [0, 96], sizes = [8, 32], strides = [1, 1]} : vector<8x128xf32> to vector<8x32xf32>
    %164 = arith.mulf %160, %146 : vector<8x32xf32>
    %165 = arith.mulf %159, %162 : vector<8x32xf32>
    %166 = arith.addf %164, %165 : vector<8x32xf32>
    %167 = math.tanh %166 : vector<8x32xf32>
    %168 = arith.mulf %163, %167 : vector<8x32xf32>
    %c0_41 = arith.constant 0 : index
    %c0_42 = arith.constant 0 : index
    %169 = vector.load %arg4[%c0_41, %c0_42] : memref<32x8xf32, #tpu.memory_space<vmem>>, vector<32x8xf32>
    %cst_43 = arith.constant dense<0.000000e+00> : vector<8x8xf32>
    %170 = tpu.matmul %168, %169, %cst_43 {dimension_numbers = #tpu.dot_dimension_numbers<[1], [0], [0], [1], [0, 0, 1, 1], [], []>} : vector<8x32xf32>, vector<32x8xf32>, vector<8x8xf32> -> vector<8x8xf32>
    %c0_44 = arith.constant 0 : index
    %c0_45 = arith.constant 0 : index
    %171 = vector.load %arg5[%c0_44, %c0_45] : memref<1x8xf32, #tpu.memory_space<vmem>>, vector<1x8xf32>
    %172 = vector.broadcast %171 : vector<1x8xf32> to vector<8x8xf32>
    %173 = arith.addf %170, %172 : vector<8x8xf32>
    %cst_46 = arith.constant 5.000000e-01 : f32
    %174 = vector.broadcast %cst_46 : f32 to vector<8x8xf32>
    %175 = arith.mulf %174, %173 : vector<8x8xf32>
    %176 = math.tanh %175 : vector<8x8xf32>
    %cst_47 = arith.constant 5.000000e-01 : f32
    %177 = vector.broadcast %cst_47 : f32 to vector<8x8xf32>
    %178 = arith.mulf %177, %176 : vector<8x8xf32>
    %cst_48 = arith.constant 5.000000e-01 : f32
    %179 = vector.broadcast %cst_48 : f32 to vector<8x8xf32>
    %180 = arith.addf %178, %179 : vector<8x8xf32>
    %c0_49 = arith.constant 0 : index
    %c0_50 = arith.constant 0 : index
    %181 = vector.load %arg6[%c0_49, %c0_50] : memref<8x8xf32, #tpu.memory_space<vmem>>, vector<8x8xf32>
    tpu.vector_store %arg6[%c0_49, %c0_50], %180 {strides = array<i32>} : memref<8x8xf32, #tpu.memory_space<vmem>>, vector<8x8xf32>,
    return
  }
}

</mosaic_0001>

<llo_original>
// kernel: teacher_model_forward.1
$region0: #{teacher_model_forward.1}
  #allocation0 [shape = 'u32[]', space=smem, size = 0x4, offset = 0x4, fixed_abs, tag = 'smem constant byte address 0x4 - core index']
  #allocation1 [shape = 'u32[144,128]{1,0:T(1,128)}', space=vmem, size = 0x12000, scoped, tag = 'internal scratch']
  %s0 = inlined_call_operand.vmem [shape: f32[64,16], index: 0, kind: input, shape index: {}]
  %s1 = inlined_call_operand.vmem [shape: f32[16,128], index: 1, kind: input, shape index: {}]
  %s2 = inlined_call_operand.vmem [shape: f32[32,128], index: 2, kind: input, shape index: {}]
  %s3 = inlined_call_operand.vmem [shape: f32[1,128], index: 3, kind: input, shape index: {}]
  %s4 = inlined_call_operand.vmem [shape: f32[32,8], index: 4, kind: input, shape index: {}]
  %s5 = inlined_call_operand.vmem [shape: f32[1,8], index: 5, kind: input, shape index: {}]
  %s6 = inlined_call_operand.hbm [shape: f32[8,8], index: 6, kind: output, shape index: {}]
  %s7 = sld [smem:[#allocation0]]
  $region34: #{teacher_model_forward.1} parent=0
    _
  %s9 = ssub.s32 1, %s7
  %s10 = scalar_select 0, %s9, %s7
  $region1: #{teacher_model_forward.1} parent=0
    #allocation2 [shape = 'u8[4096]{0}', space=vmem, size = 0x1000, scoped, tag = 'output window, operand 0, single buffered']
    #allocation3 [shape = 's32[1]{0}', space=sflag, size = 0x4, scoped, tag = 'scoped memory for teacher_model_forward.1']
    %11 = vsyncpa [#allocation3], 0
    // Predicated region
    $region2: #{teacher_model_forward.1} parent=1 // pred_check
      _
    $region3: #{teacher_model_forward.1} parent=1 // pred_check_branch
      %13 = sbr.rel (0) target = $region5
    $region4: #{teacher_model_forward.1} parent=1 // pred_region
      _
    $region5: #{teacher_model_forward.1} parent=1 // pred_fallthru
      _
    // Predicated region
    $region6: #{teacher_model_forward.1} parent=1 // pred_check
      _
    $region7: #{teacher_model_forward.1} parent=1 // pred_check_branch
      %15 = sbr.rel (0) target = $region9
    $region8: #{teacher_model_forward.1} parent=1 // pred_region
      _
    $region9: #{teacher_model_forward.1} parent=1 // pred_fallthru
      _
    // Predicated region
    $region10: #{teacher_model_forward.1} parent=1 // pred_check
      _
    $region11: #{teacher_model_forward.1} parent=1 // pred_check_branch
      %17 = sbr.rel (0) target = $region13
    $region12: #{teacher_model_forward.1} parent=1 // pred_region
      _
    $region13: #{teacher_model_forward.1} parent=1 // pred_fallthru
      _
    // Predicated region
    $region14: #{teacher_model_forward.1} parent=1 // pred_check
      _
    $region15: #{teacher_model_forward.1} parent=1 // pred_check_branch
      %19 = sbr.rel (0) target = $region17
    $region16: #{teacher_model_forward.1} parent=1 // pred_region
      _
    $region17: #{teacher_model_forward.1} parent=1 // pred_fallthru
      _
    // Predicated region
    $region18: #{teacher_model_forward.1} parent=1 // pred_check
      _
    $region19: #{teacher_model_forward.1} parent=1 // pred_check_branch
      %21 = sbr.rel (0) target = $region21
    $region20: #{teacher_model_forward.1} parent=1 // pred_region
      _
    $region21: #{teacher_model_forward.1} parent=1 // pred_fallthru
      _
    // Predicated region
    $region22: #{teacher_model_forward.1} parent=1 // pred_check
      _
    $region23: #{teacher_model_forward.1} parent=1 // pred_check_branch
      %23 = sbr.rel (0) target = $region25
    $region24: #{teacher_model_forward.1} parent=1 // pred_region
      _
    $region25: #{teacher_model_forward.1} parent=1 // pred_fallthru
      _
    %v24 = vld [vmem:[%s0] sm:$0xff]
    %v25 = vld [vmem:[%s0 + $0x8] sm:$0xff]
    %v26 = vld [vmem:[%s0 + $0x10] sm:$0xff]
    %v27 = vld [vmem:[%s0 + $0x18] sm:$0xff]
    %v28 = vld [vmem:[%s0 + $0x20] sm:$0xff]
    %v29 = vld [vmem:[%s0 + $0x28] sm:$0xff]
    %v30 = vld [vmem:[%s0 + $0x30] sm:$0xff]
    %v31 = vld [vmem:[%s0 + $0x38] sm:$0xff]
    %v32 = vld [vmem:[%s1] sm:$0xff]
    %v33 = vld [vmem:[%s1 + $0x8] sm:$0xff]
    %v34 = vld [vmem:[%s3] sm:$0x1]
    %v36 = vlaneseq
    %v37 = vshrl.u32 %v36, 7
    %v38 = vsub.s32 0, %v37
    %v39 = vrot.slane %v34, %v38
    %vm41 = vcmask 130048
    %v43 = vsel %vm41, %v24, 0
    %v46 = vsel %vm41, %v25, 0
    %v49 = vsel %vm41, %v26, 0
    %v52 = vsel %vm41, %v27, 0
    %v55 = vsel %vm41, %v28, 0
    %v58 = vsel %vm41, %v29, 0
    %v61 = vsel %vm41, %v30, 0
    %v64 = vsel %vm41, %v31, 0
    %66 = vmatprep.subr.mxu0 0.0
    %67 = vmatpush1.msra.mxu0 0.0
    %68 = vmatprep.subr.mxu0 0.0
    %69 = vmatpush1.msra.mxu0 0.0
    %70 = vmatprep.subr.mxu0 0.0
    %71 = vmatpush1.msra.mxu0 0.0
    %72 = vmatprep.subr.mxu0 0.0
    %73 = vmatpush1.msra.mxu0 0.0
    %74 = vmatprep.subr.mxu0 0.0
    %75 = vmatpush1.msra.mxu0 0.0
    %76 = vmatprep.subr.mxu0 0.0
    %77 = vmatpush1.msra.mxu0 0.0
    %78 = vmatprep.subr.mxu0 0.0
    %79 = vmatpush1.msra.mxu0 0.0
    %80 = vmatprep.subr.mxu0 0.0
    %81 = vmatpush1.msra.mxu0 0.0
    %82 = vmatprep.subr.mxu0 0.0
    %83 = vmatpush1.msra.mxu0 0.0
    %84 = vmatprep.subr.mxu0 0.0
    %85 = vmatpush1.msra.mxu0 0.0
    %86 = vmatprep.subr.mxu0 0.0
    %87 = vmatpush1.msra.mxu0 0.0
    %88 = vmatprep.subr.mxu0 0.0
    %89 = vmatpush1.msra.mxu0 0.0
    %90 = vmatprep.subr.mxu0 0.0
    %91 = vmatpush1.msra.mxu0 0.0
    %92 = vmatprep.subr.mxu0 0.0
    %93 = vmatpush1.msra.mxu0 0.0
    %94 = vmatprep.subr.mxu0 0.0
    %95 = vmatpush1.msra.mxu0 %v33
    %96 = vmatprep.subr.mxu0 0.0
    %97 = vmatpush1.msra.mxu0 %v32
    %98 = vmatprep.subr.mxu0 0.0
    %99 = vmatpush2.msra.mxu0 0.0
    %100 = vmatprep.subr.mxu0 0.0
    %101 = vmatpush2.msra.mxu0 0.0
    %102 = vmatprep.subr.mxu0 0.0
    %103 = vmatpush2.msra.mxu0 0.0
    %104 = vmatprep.subr.mxu0 0.0
    %105 = vmatpush2.msra.mxu0 0.0
    %106 = vmatprep.subr.mxu0 0.0
    %107 = vmatpush2.msra.mxu0 0.0
    %108 = vmatprep.subr.mxu0 0.0
    %109 = vmatpush2.msra.mxu0 0.0
    %110 = vmatprep.subr.mxu0 0.0
    %111 = vmatpush2.msra.mxu0 0.0
    %112 = vmatprep.subr.mxu0 0.0
    %113 = vmatpush2.msra.mxu0 0.0
    %114 = vmatprep.subr.mxu0 0.0
    %115 = vmatpush2.msra.mxu0 0.0
    %116 = vmatprep.subr.mxu0 0.0
    %117 = vmatpush2.msra.mxu0 0.0
    %118 = vmatprep.subr.mxu0 0.0
    %119 = vmatpush2.msra.mxu0 0.0
    %120 = vmatprep.subr.mxu0 0.0
    %121 = vmatpush2.msra.mxu0 0.0
    %122 = vmatprep.subr.mxu0 0.0
    %123 = vmatpush2.msra.mxu0 0.0
    %124 = vmatprep.subr.mxu0 0.0
    %125 = vmatpush2.msra.mxu0 0.0
    %126 = vmatprep.subr.mxu0 0.0
    %127 = vmatpush2.msra.mxu0 0.0
    %128 = vmatprep.subr.mxu0 0.0
    %129 = vmatpush2.msra.mxu0 0.0
    %130 = vmatprep.mubr.f32.mxu0 0.0
    %131 = vmatmul.mubr.f32.gmra.mxu0 %v43
    %v132 = vpop.f32.mrf.mxu0
    %v133 = vadd.f32 %v39, %v132
    %v134 = vpop.f32.mrf.mxu0
    %135 = vmatprep.mubr.f32.mxu0 0.0
    %136 = vmatmul.mubr.f32.gmra.mxu0 %v46
    %v137 = vpop.f32.mrf.mxu0
    %v138 = vadd.f32 %v39, %v137
    %v139 = vpop.f32.mrf.mxu0
    %140 = vmatprep.mubr.f32.mxu0 0.0
    %141 = vmatmul.mubr.f32.gmra.mxu0 %v49
    %v142 = vpop.f32.mrf.mxu0
    %v143 = vadd.f32 %v39, %v142
    %v144 = vpop.f32.mrf.mxu0
    %145 = vmatprep.mubr.f32.mxu0 0.0
    %146 = vmatmul.mubr.f32.gmra.mxu0 %v52
    %v147 = vpop.f32.mrf.mxu0
    %v148 = vadd.f32 %v39, %v147
    %v149 = vpop.f32.mrf.mxu0
    %150 = vmatprep.mubr.f32.mxu0 0.0
    %151 = vmatmul.mubr.f32.gmra.mxu0 %v55
    %v152 = vpop.f32.mrf.mxu0
    %v153 = vadd.f32 %v39, %v152
    %v154 = vpop.f32.mrf.mxu0
    %155 = vmatprep.mubr.f32.mxu0 0.0
    %156 = vmatmul.mubr.f32.gmra.mxu0 %v58
    %v157 = vpop.f32.mrf.mxu0
    %v158 = vadd.f32 %v39, %v157
    %v159 = vpop.f32.mrf.mxu0
    %160 = vmatprep.mubr.f32.mxu0 0.0
    %161 = vmatmul.mubr.f32.gmra.mxu0 %v61
    %v162 = vpop.f32.mrf.mxu0
    %v163 = vadd.f32 %v39, %v162
    %v164 = vpop.f32.mrf.mxu0
    %165 = vmatprep.mubr.f32.mxu0 0.0
    %166 = vmatmul.mubr.f32.gmra.mxu0 %v64
    %v167 = vpop.f32.mrf.mxu0
    %v168 = vadd.f32 %v39, %v167
    %v169 = vpop.f32.mrf.mxu0
    %170 = vdwg.mxu0
    %v171 = vld [vmem:[%s2] sm:$0xff]
    %v172 = vld [vmem:[%s2 + $0x8] sm:$0xff]
    %v173 = vld [vmem:[%s2 + $0x10] sm:$0xff]
    %v174 = vld [vmem:[%s2 + $0x18] sm:$0xff]
    %vm175 = vcmask 261120
    %v177 = vsel %vm175, 0.0, 0
    %179 = vmatprep.subr.mxu0 0.0
    %180 = vmatpush1.msra.mxu0 0.0
    %181 = vmatprep.subr.mxu0 0.0
    %182 = vmatpush1.msra.mxu0 0.0
    %183 = vmatprep.subr.mxu0 0.0
    %184 = vmatpush1.msra.mxu0 0.0
    %185 = vmatprep.subr.mxu0 0.0
    %186 = vmatpush1.msra.mxu0 0.0
    %187 = vmatprep.subr.mxu0 0.0
    %188 = vmatpush1.msra.mxu0 0.0
    %189 = vmatprep.subr.mxu0 0.0
    %190 = vmatpush1.msra.mxu0 0.0
    %191 = vmatprep.subr.mxu0 0.0
    %192 = vmatpush1.msra.mxu0 0.0
    %193 = vmatprep.subr.mxu0 0.0
    %194 = vmatpush1.msra.mxu0 0.0
    %195 = vmatprep.subr.mxu0 0.0
    %196 = vmatpush1.msra.mxu0 0.0
    %197 = vmatprep.subr.mxu0 0.0
    %198 = vmatpush1.msra.mxu0 0.0
    %199 = vmatprep.subr.mxu0 0.0
    %200 = vmatpush1.msra.mxu0 0.0
    %201 = vmatprep.subr.mxu0 0.0
    %202 = vmatpush1.msra.mxu0 0.0
    %203 = vmatprep.subr.mxu0 0.0
    %204 = vmatpush1.msra.mxu0 %v174
    %205 = vmatprep.subr.mxu0 0.0
    %206 = vmatpush1.msra.mxu0 %v173
    %207 = vmatprep.subr.mxu0 0.0
    %208 = vmatpush1.msra.mxu0 %v172
    %209 = vmatprep.subr.mxu0 0.0
    %210 = vmatpush1.msra.mxu0 %v171
    %211 = vmatprep.subr.mxu0 0.0
    %212 = vmatpush2.msra.mxu0 0.0
    %213 = vmatprep.subr.mxu0 0.0
    %214 = vmatpush2.msra.mxu0 0.0
    %215 = vmatprep.subr.mxu0 0.0
    %216 = vmatpush2.msra.mxu0 0.0
    %217 = vmatprep.subr.mxu0 0.0
    %218 = vmatpush2.msra.mxu0 0.0
    %219 = vmatprep.subr.mxu0 0.0
    %220 = vmatpush2.msra.mxu0 0.0
    %221 = vmatprep.subr.mxu0 0.0
    %222 = vmatpush2.msra.mxu0 0.0
    %223 = vmatprep.subr.mxu0 0.0
    %224 = vmatpush2.msra.mxu0 0.0
    %225 = vmatprep.subr.mxu0 0.0
    %226 = vmatpush2.msra.mxu0 0.0
    %227 = vmatprep.subr.mxu0 0.0
    %228 = vmatpush2.msra.mxu0 0.0
    %229 = vmatprep.subr.mxu0 0.0
    %230 = vmatpush2.msra.mxu0 0.0
    %231 = vmatprep.subr.mxu0 0.0
    %232 = vmatpush2.msra.mxu0 0.0
    %233 = vmatprep.subr.mxu0 0.0
    %234 = vmatpush2.msra.mxu0 0.0
    %235 = vmatprep.subr.mxu0 0.0
    %236 = vmatpush2.msra.mxu0 0.0
    %237 = vmatprep.subr.mxu0 0.0
    %238 = vmatpush2.msra.mxu0 0.0
    %239 = vmatprep.subr.mxu0 0.0
    %240 = vmatpush2.msra.mxu0 0.0
    %241 = vmatprep.subr.mxu0 0.0
    %242 = vmatpush2.msra.mxu0 0.0
    %243 = vmatprep.mubr.f32.mxu0 0.0
    %244 = vmatmul.mubr.f32.gmra.mxu0 %v177
    %v245 = vpop.f32.mrf.mxu0
    %v246 = vadd.f32 0.0, %v245
    %v247 = vpop.f32.mrf.mxu0
    %248 = vdwg.mxu0
    %v249 = vadd.f32 %v133, %v246
    %v250 = vmul.f32 %v249, 0.5
    %v251 = vtanh.pop %v250
    %v252 = vmul.f32 %v251, 0.5
    %v253 = vadd.f32 %v252, 0.5
    %v254 = vtanh.pop %v249
    %v255 = vmul.f32 %v253, 0.0
    %257 = vrot.lane.b32.xlu0 %v254, 64
    %v258 = vpop.permute.xlu0 %257
    %v260 = vmul.f32 %v253, %v258
    %262 = vrot.lane.b32.xlu0 %v260, 32
    %v263 = vpop.permute.xlu0 %262
    %v265 = vadd.f32 %v255, %v263
    %v266 = vtanh.pop %v265
    %268 = vrot.lane.b32.xlu0 %v266, 64
    %v269 = vpop.permute.xlu0 %268
    %v271 = vmul.f32 %v253, %v269
    %273 = vrot.lane.b32.xlu0 %v271, 32
    %v274 = vpop.permute.xlu0 %273
    %v275 = vsel %vm175, %v274, 0
    %277 = vmatprep.subr.mxu0 0.0
    %278 = vmatpush1.msra.mxu0 0.0
    %279 = vmatprep.subr.mxu0 0.0
    %280 = vmatpush1.msra.mxu0 0.0
    %281 = vmatprep.subr.mxu0 0.0
    %282 = vmatpush1.msra.mxu0 0.0
    %283 = vmatprep.subr.mxu0 0.0
    %284 = vmatpush1.msra.mxu0 0.0
    %285 = vmatprep.subr.mxu0 0.0
    %286 = vmatpush1.msra.mxu0 0.0
    %287 = vmatprep.subr.mxu0 0.0
    %288 = vmatpush1.msra.mxu0 0.0
    %289 = vmatprep.subr.mxu0 0.0
    %290 = vmatpush1.msra.mxu0 0.0
    %291 = vmatprep.subr.mxu0 0.0
    %292 = vmatpush1.msra.mxu0 0.0
    %293 = vmatprep.subr.mxu0 0.0
    %294 = vmatpush1.msra.mxu0 0.0
    %295 = vmatprep.subr.mxu0 0.0
    %296 = vmatpush1.msra.mxu0 0.0
    %297 = vmatprep.subr.mxu0 0.0
    %298 = vmatpush1.msra.mxu0 0.0
    %299 = vmatprep.subr.mxu0 0.0
    %300 = vmatpush1.msra.mxu0 0.0
    %301 = vmatprep.subr.mxu0 0.0
    %302 = vmatpush1.msra.mxu0 %v174
    %303 = vmatprep.subr.mxu0 0.0
    %304 = vmatpush1.msra.mxu0 %v173
    %305 = vmatprep.subr.mxu0 0.0
    %306 = vmatpush1.msra.mxu0 %v172
    %307 = vmatprep.subr.mxu0 0.0
    %308 = vmatpush1.msra.mxu0 %v171
    %309 = vmatprep.subr.mxu0 0.0
    %310 = vmatpush2.msra.mxu0 0.0
    %311 = vmatprep.subr.mxu0 0.0
    %312 = vmatpush2.msra.mxu0 0.0
    %313 = vmatprep.subr.mxu0 0.0
    %314 = vmatpush2.msra.mxu0 0.0
    %315 = vmatprep.subr.mxu0 0.0
    %316 = vmatpush2.msra.mxu0 0.0
    %317 = vmatprep.subr.mxu0 0.0
    %318 = vmatpush2.msra.mxu0 0.0
    %319 = vmatprep.subr.mxu0 0.0
    %320 = vmatpush2.msra.mxu0 0.0
    %321 = vmatprep.subr.mxu0 0.0
    %322 = vmatpush2.msra.mxu0 0.0
    %323 = vmatprep.subr.mxu0 0.0
    %324 = vmatpush2.msra.mxu0 0.0
    %325 = vmatprep.subr.mxu0 0.0
    %326 = vmatpush2.msra.mxu0 0.0
    %327 = vmatprep.subr.mxu0 0.0
    %328 = vmatpush2.msra.mxu0 0.0
    %329 = vmatprep.subr.mxu0 0.0
    %330 = vmatpush2.msra.mxu0 0.0
    %331 = vmatprep.subr.mxu0 0.0
    %332 = vmatpush2.msra.mxu0 0.0
    %333 = vmatprep.subr.mxu0 0.0
    %334 = vmatpush2.msra.mxu0 0.0
    %335 = vmatprep.subr.mxu0 0.0
    %336 = vmatpush2.msra.mxu0 0.0
    %337 = vmatprep.subr.mxu0 0.0
    %338 = vmatpush2.msra.mxu0 0.0
    %339 = vmatprep.subr.mxu0 0.0
    %340 = vmatpush2.msra.mxu0 0.0
    %341 = vmatprep.mubr.f32.mxu0 0.0
    %342 = vmatmul.mubr.f32.gmra.mxu0 %v275
    %v343 = vpop.f32.mrf.mxu0
    %v344 = vadd.f32 0.0, %v343
    %v345 = vpop.f32.mrf.mxu0
    %346 = vdwg.mxu0
    %v347 = vadd.f32 %v138, %v344
    %v348 = vmul.f32 %v347, 0.5
    %v349 = vtanh.pop %v348
    %v350 = vmul.f32 %v349, 0.5
    %v351 = vadd.f32 %v350, 0.5
    %v352 = vtanh.pop %v347
    %v353 = vmul.f32 %v351, %v265
    %355 = vrot.lane.b32.xlu0 %v352, 64
    %v356 = vpop.permute.xlu0 %355
    %v358 = vmul.f32 %v351, %v356
    %360 = vrot.lane.b32.xlu0 %v358, 32
    %v361 = vpop.permute.xlu0 %360
    %v363 = vadd.f32 %v353, %v361
    %v364 = vtanh.pop %v363
    %366 = vrot.lane.b32.xlu0 %v364, 64
    %v367 = vpop.permute.xlu0 %366
    %v369 = vmul.f32 %v351, %v367
    %371 = vrot.lane.b32.xlu0 %v369, 32
    %v372 = vpop.permute.xlu0 %371
    %v373 = vsel %vm175, %v372, 0
    %375 = vmatprep.subr.mxu0 0.0
    %376 = vmatpush1.msra.mxu0 0.0
    %377 = vmatprep.subr.mxu0 0.0
    %378 = vmatpush1.msra.mxu0 0.0
    %379 = vmatprep.subr.mxu0 0.0
    %380 = vmatpush1.msra.mxu0 0.0
    %381 = vmatprep.subr.mxu0 0.0
    %382 = vmatpush1.msra.mxu0 0.0
    %383 = vmatprep.subr.mxu0 0.0
    %384 = vmatpush1.msra.mxu0 0.0
    %385 = vmatprep.subr.mxu0 0.0
    %386 = vmatpush1.msra.mxu0 0.0
    %387 = vmatprep.subr.mxu0 0.0
    %388 = vmatpush1.msra.mxu0 0.0
    %389 = vmatprep.subr.mxu0 0.0
    %390 = vmatpush1.msra.mxu0 0.0
    %391 = vmatprep.subr.mxu0 0.0
    %392 = vmatpush1.msra.mxu0 0.0
    %393 = vmatprep.subr.mxu0 0.0
    %394 = vmatpush1.msra.mxu0 0.0
    %395 = vmatprep.subr.mxu0 0.0
    %396 = vmatpush1.msra.mxu0 0.0
    %397 = vmatprep.subr.mxu0 0.0
    %398 = vmatpush1.msra.mxu0 0.0
    %399 = vmatprep.subr.mxu0 0.0
    %400 = vmatpush1.msra.mxu0 %v174
    %401 = vmatprep.subr.mxu0 0.0
    %402 = vmatpush1.msra.mxu0 %v173
    %403 = vmatprep.subr.mxu0 0.0
    %404 = vmatpush1.msra.mxu0 %v172
    %405 = vmatprep.subr.mxu0 0.0
    %406 = vmatpush1.msra.mxu0 %v171
    %407 = vmatprep.subr.mxu0 0.0
    %408 = vmatpush2.msra.mxu0 0.0
    %409 = vmatprep.subr.mxu0 0.0
    %410 = vmatpush2.msra.mxu0 0.0
    %411 = vmatprep.subr.mxu0 0.0
    %412 = vmatpush2.msra.mxu0 0.0
    %413 = vmatprep.subr.mxu0 0.0
    %414 = vmatpush2.msra.mxu0 0.0
    %415 = vmatprep.subr.mxu0 0.0
    %416 = vmatpush2.msra.mxu0 0.0
    %417 = vmatprep.subr.mxu0 0.0
    %418 = vmatpush2.msra.mxu0 0.0
    %419 = vmatprep.subr.mxu0 0.0
    %420 = vmatpush2.msra.mxu0 0.0
    %421 = vmatprep.subr.mxu0 0.0
    %422 = vmatpush2.msra.mxu0 0.0
    %423 = vmatprep.subr.mxu0 0.0
    %424 = vmatpush2.msra.mxu0 0.0
    %425 = vmatprep.subr.mxu0 0.0
    %426 = vmatpush2.msra.mxu0 0.0
    %427 = vmatprep.subr.mxu0 0.0
    %428 = vmatpush2.msra.mxu0 0.0
    %429 = vmatprep.subr.mxu0 0.0
    %430 = vmatpush2.msra.mxu0 0.0
    %431 = vmatprep.subr.mxu0 0.0
    %432 = vmatpush2.msra.mxu0 0.0
    %433 = vmatprep.subr.mxu0 0.0
    %434 = vmatpush2.msra.mxu0 0.0
    %435 = vmatprep.subr.mxu0 0.0
    %436 = vmatpush2.msra.mxu0 0.0
    %437 = vmatprep.subr.mxu0 0.0
    %438 = vmatpush2.msra.mxu0 0.0
    %439 = vmatprep.mubr.f32.mxu0 0.0
    %440 = vmatmul.mubr.f32.gmra.mxu0 %v373
    %v441 = vpop.f32.mrf.mxu0
    %v442 = vadd.f32 0.0, %v441
    %v443 = vpop.f32.mrf.mxu0
    %444 = vdwg.mxu0
    %v445 = vadd.f32 %v143, %v442
    %v446 = vmul.f32 %v445, 0.5
    %v447 = vtanh.pop %v446
    %v448 = vmul.f32 %v447, 0.5
    %v449 = vadd.f32 %v448, 0.5
    %v450 = vtanh.pop %v445
    %v451 = vmul.f32 %v449, %v363
    %453 = vrot.lane.b32.xlu0 %v450, 64
    %v454 = vpop.permute.xlu0 %453
    %v456 = vmul.f32 %v449, %v454
    %458 = vrot.lane.b32.xlu0 %v456, 32
    %v459 = vpop.permute.xlu0 %458
    %v461 = vadd.f32 %v451, %v459
    %v462 = vtanh.pop %v461
    %464 = vrot.lane.b32.xlu0 %v462, 64
    %v465 = vpop.permute.xlu0 %464
    %v467 = vmul.f32 %v449, %v465
    %469 = vrot.lane.b32.xlu0 %v467, 32
    %v470 = vpop.permute.xlu0 %469
    %v471 = vsel %vm175, %v470, 0
    %473 = vmatprep.subr.mxu0 0.0
    %474 = vmatpush1.msra.mxu0 0.0
    %475 = vmatprep.subr.mxu0 0.0
    %476 = vmatpush1.msra.mxu0 0.0
    %477 = vmatprep.subr.mxu0 0.0
    %478 = vmatpush1.msra.mxu0 0.0
    %479 = vmatprep.subr.mxu0 0.0
    %480 = vmatpush1.msra.mxu0 0.0
    %481 = vmatprep.subr.mxu0 0.0
    %482 = vmatpush1.msra.mxu0 0.0
    %483 = vmatprep.subr.mxu0 0.0
    %484 = vmatpush1.msra.mxu0 0.0
    %485 = vmatprep.subr.mxu0 0.0
    %486 = vmatpush1.msra.mxu0 0.0
    %487 = vmatprep.subr.mxu0 0.0
    %488 = vmatpush1.msra.mxu0 0.0
    %489 = vmatprep.subr.mxu0 0.0
    %490 = vmatpush1.msra.mxu0 0.0
    %491 = vmatprep.subr.mxu0 0.0
    %492 = vmatpush1.msra.mxu0 0.0
    %493 = vmatprep.subr.mxu0 0.0
    %494 = vmatpush1.msra.mxu0 0.0
    %495 = vmatprep.subr.mxu0 0.0
    %496 = vmatpush1.msra.mxu0 0.0
    %497 = vmatprep.subr.mxu0 0.0
    %498 = vmatpush1.msra.mxu0 %v174
    %499 = vmatprep.subr.mxu0 0.0
    %500 = vmatpush1.msra.mxu0 %v173
    %501 = vmatprep.subr.mxu0 0.0
    %502 = vmatpush1.msra.mxu0 %v172
    %503 = vmatprep.subr.mxu0 0.0
    %504 = vmatpush1.msra.mxu0 %v171
    %505 = vmatprep.subr.mxu0 0.0
    %506 = vmatpush2.msra.mxu0 0.0
    %507 = vmatprep.subr.mxu0 0.0
    %508 = vmatpush2.msra.mxu0 0.0
    %509 = vmatprep.subr.mxu0 0.0
    %510 = vmatpush2.msra.mxu0 0.0
    %511 = vmatprep.subr.mxu0 0.0
    %512 = vmatpush2.msra.mxu0 0.0
    %513 = vmatprep.subr.mxu0 0.0
    %514 = vmatpush2.msra.mxu0 0.0
    %515 = vmatprep.subr.mxu0 0.0
    %516 = vmatpush2.msra.mxu0 0.0
    %517 = vmatprep.subr.mxu0 0.0
    %518 = vmatpush2.msra.mxu0 0.0
    %519 = vmatprep.subr.mxu0 0.0
    %520 = vmatpush2.msra.mxu0 0.0
    %521 = vmatprep.subr.mxu0 0.0
    %522 = vmatpush2.msra.mxu0 0.0
    %523 = vmatprep.subr.mxu0 0.0
    %524 = vmatpush2.msra.mxu0 0.0
    %525 = vmatprep.subr.mxu0 0.0
    %526 = vmatpush2.msra.mxu0 0.0
    %527 = vmatprep.subr.mxu0 0.0
    %528 = vmatpush2.msra.mxu0 0.0
    %529 = vmatprep.subr.mxu0 0.0
    %530 = vmatpush2.msra.mxu0 0.0
    %531 = vmatprep.subr.mxu0 0.0
    %532 = vmatpush2.msra.mxu0 0.0
    %533 = vmatprep.subr.mxu0 0.0
    %534 = vmatpush2.msra.mxu0 0.0
    %535 = vmatprep.subr.mxu0 0.0
    %536 = vmatpush2.msra.mxu0 0.0
    %537 = vmatprep.mubr.f32.mxu0 0.0
    %538 = vmatmul.mubr.f32.gmra.mxu0 %v471
    %v539 = vpop.f32.mrf.mxu0
    %v540 = vadd.f32 0.0, %v539
    %v541 = vpop.f32.mrf.mxu0
    %542 = vdwg.mxu0
    %v543 = vadd.f32 %v148, %v540
    %v544 = vmul.f32 %v543, 0.5
    %v545 = vtanh.pop %v544
    %v546 = vmul.f32 %v545, 0.5
    %v547 = vadd.f32 %v546, 0.5
    %v548 = vtanh.pop %v543
    %v549 = vmul.f32 %v547, %v461
    %551 = vrot.lane.b32.xlu0 %v548, 64
    %v552 = vpop.permute.xlu0 %551
    %v554 = vmul.f32 %v547, %v552
    %556 = vrot.lane.b32.xlu0 %v554, 32
    %v557 = vpop.permute.xlu0 %556
    %v559 = vadd.f32 %v549, %v557
    %v560 = vtanh.pop %v559
    %562 = vrot.lane.b32.xlu0 %v560, 64
    %v563 = vpop.permute.xlu0 %562
    %v565 = vmul.f32 %v547, %v563
    %567 = vrot.lane.b32.xlu0 %v565, 32
    %v568 = vpop.permute.xlu0 %567
    %v569 = vsel %vm175, %v568, 0
    %571 = vmatprep.subr.mxu0 0.0
    %572 = vmatpush1.msra.mxu0 0.0
    %573 = vmatprep.subr.mxu0 0.0
    %574 = vmatpush1.msra.mxu0 0.0
    %575 = vmatprep.subr.mxu0 0.0
    %576 = vmatpush1.msra.mxu0 0.0
    %577 = vmatprep.subr.mxu0 0.0
    %578 = vmatpush1.msra.mxu0 0.0
    %579 = vmatprep.subr.mxu0 0.0
    %580 = vmatpush1.msra.mxu0 0.0
    %581 = vmatprep.subr.mxu0 0.0
    %582 = vmatpush1.msra.mxu0 0.0
    %583 = vmatprep.subr.mxu0 0.0
    %584 = vmatpush1.msra.mxu0 0.0
    %585 = vmatprep.subr.mxu0 0.0
    %586 = vmatpush1.msra.mxu0 0.0
    %587 = vmatprep.subr.mxu0 0.0
    %588 = vmatpush1.msra.mxu0 0.0
    %589 = vmatprep.subr.mxu0 0.0
    %590 = vmatpush1.msra.mxu0 0.0
    %591 = vmatprep.subr.mxu0 0.0
    %592 = vmatpush1.msra.mxu0 0.0
    %593 = vmatprep.subr.mxu0 0.0
    %594 = vmatpush1.msra.mxu0 0.0
    %595 = vmatprep.subr.mxu0 0.0
    %596 = vmatpush1.msra.mxu0 %v174
    %597 = vmatprep.subr.mxu0 0.0
    %598 = vmatpush1.msra.mxu0 %v173
    %599 = vmatprep.subr.mxu0 0.0
    %600 = vmatpush1.msra.mxu0 %v172
    %601 = vmatprep.subr.mxu0 0.0
    %602 = vmatpush1.msra.mxu0 %v171
    %603 = vmatprep.subr.mxu0 0.0
    %604 = vmatpush2.msra.mxu0 0.0
    %605 = vmatprep.subr.mxu0 0.0
    %606 = vmatpush2.msra.mxu0 0.0
    %607 = vmatprep.subr.mxu0 0.0
    %608 = vmatpush2.msra.mxu0 0.0
    %609 = vmatprep.subr.mxu0 0.0
    %610 = vmatpush2.msra.mxu0 0.0
    %611 = vmatprep.subr.mxu0 0.0
    %612 = vmatpush2.msra.mxu0 0.0
    %613 = vmatprep.subr.mxu0 0.0
    %614 = vmatpush2.msra.mxu0 0.0
    %615 = vmatprep.subr.mxu0 0.0
    %616 = vmatpush2.msra.mxu0 0.0
    %617 = vmatprep.subr.mxu0 0.0
    %618 = vmatpush2.msra.mxu0 0.0
    %619 = vmatprep.subr.mxu0 0.0
    %620 = vmatpush2.msra.mxu0 0.0
    %621 = vmatprep.subr.mxu0 0.0
    %622 = vmatpush2.msra.mxu0 0.0
    %623 = vmatprep.subr.mxu0 0.0
    %624 = vmatpush2.msra.mxu0 0.0
    %625 = vmatprep.subr.mxu0 0.0
    %626 = vmatpush2.msra.mxu0 0.0
    %627 = vmatprep.subr.mxu0 0.0
    %628 = vmatpush2.msra.mxu0 0.0
    %629 = vmatprep.subr.mxu0 0.0
    %630 = vmatpush2.msra.mxu0 0.0
    %631 = vmatprep.subr.mxu0 0.0
    %632 = vmatpush2.msra.mxu0 0.0
    %633 = vmatprep.subr.mxu0 0.0
    %634 = vmatpush2.msra.mxu0 0.0
    %635 = vmatprep.mubr.f32.mxu0 0.0
    %636 = vmatmul.mubr.f32.gmra.mxu0 %v569
    %v637 = vpop.f32.mrf.mxu0
    %v638 = vadd.f32 0.0, %v637
    %v639 = vpop.f32.mrf.mxu0
    %640 = vdwg.mxu0
    %v641 = vadd.f32 %v153, %v638
    %v642 = vmul.f32 %v641, 0.5
    %v643 = vtanh.pop %v642
    %v644 = vmul.f32 %v643, 0.5
    %v645 = vadd.f32 %v644, 0.5
    %v646 = vtanh.pop %v641
    %v647 = vmul.f32 %v645, %v559
    %649 = vrot.lane.b32.xlu0 %v646, 64
    %v650 = vpop.permute.xlu0 %649
    %v652 = vmul.f32 %v645, %v650
    %654 = vrot.lane.b32.xlu0 %v652, 32
    %v655 = vpop.permute.xlu0 %654
    %v657 = vadd.f32 %v647, %v655
    %v658 = vtanh.pop %v657
    %660 = vrot.lane.b32.xlu0 %v658, 64
    %v661 = vpop.permute.xlu0 %660
    %v663 = vmul.f32 %v645, %v661
    %665 = vrot.lane.b32.xlu0 %v663, 32
    %v666 = vpop.permute.xlu0 %665
    %v667 = vsel %vm175, %v666, 0
    %669 = vmatprep.subr.mxu0 0.0
    %670 = vmatpush1.msra.mxu0 0.0
    %671 = vmatprep.subr.mxu0 0.0
    %672 = vmatpush1.msra.mxu0 0.0
    %673 = vmatprep.subr.mxu0 0.0
    %674 = vmatpush1.msra.mxu0 0.0
    %675 = vmatprep.subr.mxu0 0.0
    %676 = vmatpush1.msra.mxu0 0.0
    %677 = vmatprep.subr.mxu0 0.0
    %678 = vmatpush1.msra.mxu0 0.0
    %679 = vmatprep.subr.mxu0 0.0
    %680 = vmatpush1.msra.mxu0 0.0
    %681 = vmatprep.subr.mxu0 0.0
    %682 = vmatpush1.msra.mxu0 0.0
    %683 = vmatprep.subr.mxu0 0.0
    %684 = vmatpush1.msra.mxu0 0.0
    %685 = vmatprep.subr.mxu0 0.0
    %686 = vmatpush1.msra.mxu0 0.0
    %687 = vmatprep.subr.mxu0 0.0
    %688 = vmatpush1.msra.mxu0 0.0
    %689 = vmatprep.subr.mxu0 0.0
    %690 = vmatpush1.msra.mxu0 0.0
    %691 = vmatprep.subr.mxu0 0.0
    %692 = vmatpush1.msra.mxu0 0.0
    %693 = vmatprep.subr.mxu0 0.0
    %694 = vmatpush1.msra.mxu0 %v174
    %695 = vmatprep.subr.mxu0 0.0
    %696 = vmatpush1.msra.mxu0 %v173
    %697 = vmatprep.subr.mxu0 0.0
    %698 = vmatpush1.msra.mxu0 %v172
    %699 = vmatprep.subr.mxu0 0.0
    %700 = vmatpush1.msra.mxu0 %v171
    %701 = vmatprep.subr.mxu0 0.0
    %702 = vmatpush2.msra.mxu0 0.0
    %703 = vmatprep.subr.mxu0 0.0
    %704 = vmatpush2.msra.mxu0 0.0
    %705 = vmatprep.subr.mxu0 0.0
    %706 = vmatpush2.msra.mxu0 0.0
    %707 = vmatprep.subr.mxu0 0.0
    %708 = vmatpush2.msra.mxu0 0.0
    %709 = vmatprep.subr.mxu0 0.0
    %710 = vmatpush2.msra.mxu0 0.0
    %711 = vmatprep.subr.mxu0 0.0
    %712 = vmatpush2.msra.mxu0 0.0
    %713 = vmatprep.subr.mxu0 0.0
    %714 = vmatpush2.msra.mxu0 0.0
    %715 = vmatprep.subr.mxu0 0.0
    %716 = vmatpush2.msra.mxu0 0.0
    %717 = vmatprep.subr.mxu0 0.0
    %718 = vmatpush2.msra.mxu0 0.0
    %719 = vmatprep.subr.mxu0 0.0
    %720 = vmatpush2.msra.mxu0 0.0
    %721 = vmatprep.subr.mxu0 0.0
    %722 = vmatpush2.msra.mxu0 0.0
    %723 = vmatprep.subr.mxu0 0.0
    %724 = vmatpush2.msra.mxu0 0.0
    %725 = vmatprep.subr.mxu0 0.0
    %726 = vmatpush2.msra.mxu0 0.0
    %727 = vmatprep.subr.mxu0 0.0
    %728 = vmatpush2.msra.mxu0 0.0
    %729 = vmatprep.subr.mxu0 0.0
    %730 = vmatpush2.msra.mxu0 0.0
    %731 = vmatprep.subr.mxu0 0.0
    %732 = vmatpush2.msra.mxu0 0.0
    %733 = vmatprep.mubr.f32.mxu0 0.0
    %734 = vmatmul.mubr.f32.gmra.mxu0 %v667
    %v735 = vpop.f32.mrf.mxu0
    %v736 = vadd.f32 0.0, %v735
    %v737 = vpop.f32.mrf.mxu0
    %738 = vdwg.mxu0
    %v739 = vadd.f32 %v158, %v736
    %v740 = vmul.f32 %v739, 0.5
    %v741 = vtanh.pop %v740
    %v742 = vmul.f32 %v741, 0.5
    %v743 = vadd.f32 %v742, 0.5
    %v744 = vtanh.pop %v739
    %v745 = vmul.f32 %v743, %v657
    %747 = vrot.lane.b32.xlu0 %v744, 64
    %v748 = vpop.permute.xlu0 %747
    %v750 = vmul.f32 %v743, %v748
    %752 = vrot.lane.b32.xlu0 %v750, 32
    %v753 = vpop.permute.xlu0 %752
    %v755 = vadd.f32 %v745, %v753
    %v756 = vtanh.pop %v755
    %758 = vrot.lane.b32.xlu0 %v756, 64
    %v759 = vpop.permute.xlu0 %758
    %v761 = vmul.f32 %v743, %v759
    %763 = vrot.lane.b32.xlu0 %v761, 32
    %v764 = vpop.permute.xlu0 %763
    %v765 = vsel %vm175, %v764, 0
    %767 = vmatprep.subr.mxu0 0.0
    %768 = vmatpush1.msra.mxu0 0.0
    %769 = vmatprep.subr.mxu0 0.0
    %770 = vmatpush1.msra.mxu0 0.0
    %771 = vmatprep.subr.mxu0 0.0
    %772 = vmatpush1.msra.mxu0 0.0
    %773 = vmatprep.subr.mxu0 0.0
    %774 = vmatpush1.msra.mxu0 0.0
    %775 = vmatprep.subr.mxu0 0.0
    %776 = vmatpush1.msra.mxu0 0.0
    %777 = vmatprep.subr.mxu0 0.0
    %778 = vmatpush1.msra.mxu0 0.0
    %779 = vmatprep.subr.mxu0 0.0
    %780 = vmatpush1.msra.mxu0 0.0
    %781 = vmatprep.subr.mxu0 0.0
    %782 = vmatpush1.msra.mxu0 0.0
    %783 = vmatprep.subr.mxu0 0.0
    %784 = vmatpush1.msra.mxu0 0.0
    %785 = vmatprep.subr.mxu0 0.0
    %786 = vmatpush1.msra.mxu0 0.0
    %787 = vmatprep.subr.mxu0 0.0
    %788 = vmatpush1.msra.mxu0 0.0
    %789 = vmatprep.subr.mxu0 0.0
    %790 = vmatpush1.msra.mxu0 0.0
    %791 = vmatprep.subr.mxu0 0.0
    %792 = vmatpush1.msra.mxu0 %v174
    %793 = vmatprep.subr.mxu0 0.0
    %794 = vmatpush1.msra.mxu0 %v173
    %795 = vmatprep.subr.mxu0 0.0
    %796 = vmatpush1.msra.mxu0 %v172
    %797 = vmatprep.subr.mxu0 0.0
    %798 = vmatpush1.msra.mxu0 %v171
    %799 = vmatprep.subr.mxu0 0.0
    %800 = vmatpush2.msra.mxu0 0.0
    %801 = vmatprep.subr.mxu0 0.0
    %802 = vmatpush2.msra.mxu0 0.0
    %803 = vmatprep.subr.mxu0 0.0
    %804 = vmatpush2.msra.mxu0 0.0
    %805 = vmatprep.subr.mxu0 0.0
    %806 = vmatpush2.msra.mxu0 0.0
    %807 = vmatprep.subr.mxu0 0.0
    %808 = vmatpush2.msra.mxu0 0.0
    %809 = vmatprep.subr.mxu0 0.0
    %810 = vmatpush2.msra.mxu0 0.0
    %811 = vmatprep.subr.mxu0 0.0
    %812 = vmatpush2.msra.mxu0 0.0
    %813 = vmatprep.subr.mxu0 0.0
    %814 = vmatpush2.msra.mxu0 0.0
    %815 = vmatprep.subr.mxu0 0.0
    %816 = vmatpush2.msra.mxu0 0.0
    %817 = vmatprep.subr.mxu0 0.0
    %818 = vmatpush2.msra.mxu0 0.0
    %819 = vmatprep.subr.mxu0 0.0
    %820 = vmatpush2.msra.mxu0 0.0
    %821 = vmatprep.subr.mxu0 0.0
    %822 = vmatpush2.msra.mxu0 0.0
    %823 = vmatprep.subr.mxu0 0.0
    %824 = vmatpush2.msra.mxu0 0.0
    %825 = vmatprep.subr.mxu0 0.0
    %826 = vmatpush2.msra.mxu0 0.0
    %827 = vmatprep.subr.mxu0 0.0
    %828 = vmatpush2.msra.mxu0 0.0
    %829 = vmatprep.subr.mxu0 0.0
    %830 = vmatpush2.msra.mxu0 0.0
    %831 = vmatprep.mubr.f32.mxu0 0.0
    %832 = vmatmul.mubr.f32.gmra.mxu0 %v765
    %v833 = vpop.f32.mrf.mxu0
    %v834 = vadd.f32 0.0, %v833
    %v835 = vpop.f32.mrf.mxu0
    %836 = vdwg.mxu0
    %v837 = vadd.f32 %v163, %v834
    %v838 = vmul.f32 %v837, 0.5
    %v839 = vtanh.pop %v838
    %v840 = vmul.f32 %v839, 0.5
    %v841 = vadd.f32 %v840, 0.5
    %v842 = vtanh.pop %v837
    %v843 = vmul.f32 %v841, %v755
    %845 = vrot.lane.b32.xlu0 %v842, 64
    %v846 = vpop.permute.xlu0 %845
    %v848 = vmul.f32 %v841, %v846
    %850 = vrot.lane.b32.xlu0 %v848, 32
    %v851 = vpop.permute.xlu0 %850
    %v853 = vadd.f32 %v843, %v851
    %v854 = vtanh.pop %v853
    %856 = vrot.lane.b32.xlu0 %v854, 64
    %v857 = vpop.permute.xlu0 %856
    %v859 = vmul.f32 %v841, %v857
    %861 = vrot.lane.b32.xlu0 %v859, 32
    %v862 = vpop.permute.xlu0 %861
    %v863 = vsel %vm175, %v862, 0
    %865 = vmatprep.subr.mxu0 0.0
    %866 = vmatpush1.msra.mxu0 0.0
    %867 = vmatprep.subr.mxu0 0.0
    %868 = vmatpush1.msra.mxu0 0.0
    %869 = vmatprep.subr.mxu0 0.0
    %870 = vmatpush1.msra.mxu0 0.0
    %871 = vmatprep.subr.mxu0 0.0
    %872 = vmatpush1.msra.mxu0 0.0
    %873 = vmatprep.subr.mxu0 0.0
    %874 = vmatpush1.msra.mxu0 0.0
    %875 = vmatprep.subr.mxu0 0.0
    %876 = vmatpush1.msra.mxu0 0.0
    %877 = vmatprep.subr.mxu0 0.0
    %878 = vmatpush1.msra.mxu0 0.0
    %879 = vmatprep.subr.mxu0 0.0
    %880 = vmatpush1.msra.mxu0 0.0
    %881 = vmatprep.subr.mxu0 0.0
    %882 = vmatpush1.msra.mxu0 0.0
    %883 = vmatprep.subr.mxu0 0.0
    %884 = vmatpush1.msra.mxu0 0.0
    %885 = vmatprep.subr.mxu0 0.0
    %886 = vmatpush1.msra.mxu0 0.0
    %887 = vmatprep.subr.mxu0 0.0
    %888 = vmatpush1.msra.mxu0 0.0
    %889 = vmatprep.subr.mxu0 0.0
    %890 = vmatpush1.msra.mxu0 %v174
    %891 = vmatprep.subr.mxu0 0.0
    %892 = vmatpush1.msra.mxu0 %v173
    %893 = vmatprep.subr.mxu0 0.0
    %894 = vmatpush1.msra.mxu0 %v172
    %895 = vmatprep.subr.mxu0 0.0
    %896 = vmatpush1.msra.mxu0 %v171
    %897 = vmatprep.subr.mxu0 0.0
    %898 = vmatpush2.msra.mxu0 0.0
    %899 = vmatprep.subr.mxu0 0.0
    %900 = vmatpush2.msra.mxu0 0.0
    %901 = vmatprep.subr.mxu0 0.0
    %902 = vmatpush2.msra.mxu0 0.0
    %903 = vmatprep.subr.mxu0 0.0
    %904 = vmatpush2.msra.mxu0 0.0
    %905 = vmatprep.subr.mxu0 0.0
    %906 = vmatpush2.msra.mxu0 0.0
    %907 = vmatprep.subr.mxu0 0.0
    %908 = vmatpush2.msra.mxu0 0.0
    %909 = vmatprep.subr.mxu0 0.0
    %910 = vmatpush2.msra.mxu0 0.0
    %911 = vmatprep.subr.mxu0 0.0
    %912 = vmatpush2.msra.mxu0 0.0
    %913 = vmatprep.subr.mxu0 0.0
    %914 = vmatpush2.msra.mxu0 0.0
    %915 = vmatprep.subr.mxu0 0.0
    %916 = vmatpush2.msra.mxu0 0.0
    %917 = vmatprep.subr.mxu0 0.0
    %918 = vmatpush2.msra.mxu0 0.0
    %919 = vmatprep.subr.mxu0 0.0
    %920 = vmatpush2.msra.mxu0 0.0
    %921 = vmatprep.subr.mxu0 0.0
    %922 = vmatpush2.msra.mxu0 0.0
    %923 = vmatprep.subr.mxu0 0.0
    %924 = vmatpush2.msra.mxu0 0.0
    %925 = vmatprep.subr.mxu0 0.0
    %926 = vmatpush2.msra.mxu0 0.0
    %927 = vmatprep.subr.mxu0 0.0
    %928 = vmatpush2.msra.mxu0 0.0
    %929 = vmatprep.mubr.f32.mxu0 0.0
    %930 = vmatmul.mubr.f32.gmra.mxu0 %v863
    %v931 = vpop.f32.mrf.mxu0
    %v932 = vadd.f32 0.0, %v931
    %v933 = vpop.f32.mrf.mxu0
    %934 = vdwg.mxu0
    %v935 = vadd.f32 %v168, %v932
    %v936 = vmul.f32 %v935, 0.5
    %v937 = vtanh.pop %v936
    %v938 = vmul.f32 %v937, 0.5
    %v939 = vadd.f32 %v938, 0.5
    %v940 = vtanh.pop %v935
    %v941 = vmul.f32 %v939, %v853
    %943 = vrot.lane.b32.xlu0 %v940, 64
    %v944 = vpop.permute.xlu0 %943
    %v946 = vmul.f32 %v939, %v944
    %948 = vrot.lane.b32.xlu0 %v946, 32
    %v949 = vpop.permute.xlu0 %948
    %v951 = vadd.f32 %v941, %v949
    %v952 = vtanh.pop %v951
    %954 = vrot.lane.b32.xlu0 %v952, 64
    %v955 = vpop.permute.xlu0 %954
    %v957 = vmul.f32 %v939, %v955
    %v958 = vld [vmem:[%s4] sm:$0xff]
    %v959 = vld [vmem:[%s4 + $0x8] sm:$0xff]
    %v960 = vld [vmem:[%s4 + $0x10] sm:$0xff]
    %v961 = vld [vmem:[%s4 + $0x18] sm:$0xff]
    %v962 = vld [vmem:[%s5] sm:$0x1]
    %v964 = vlaneseq
    %v965 = vshrl.u32 %v964, 7
    %v966 = vsub.s32 0, %v965
    %v967 = vrot.slane %v962, %v966
    %970 = vrot.lane.b32.xlu0 %v957, 32
    %v971 = vpop.permute.xlu0 %970
    %v972 = vsel %vm175, %v971, 0
    %974 = vmatprep.subr.mxu0 0.0
    %975 = vmatpush1.msra.mxu0 0.0
    %976 = vmatprep.subr.mxu0 0.0
    %977 = vmatpush1.msra.mxu0 0.0
    %978 = vmatprep.subr.mxu0 0.0
    %979 = vmatpush1.msra.mxu0 0.0
    %980 = vmatprep.subr.mxu0 0.0
    %981 = vmatpush1.msra.mxu0 0.0
    %982 = vmatprep.subr.mxu0 0.0
    %983 = vmatpush1.msra.mxu0 0.0
    %984 = vmatprep.subr.mxu0 0.0
    %985 = vmatpush1.msra.mxu0 0.0
    %986 = vmatprep.subr.mxu0 0.0
    %987 = vmatpush1.msra.mxu0 0.0
    %988 = vmatprep.subr.mxu0 0.0
    %989 = vmatpush1.msra.mxu0 0.0
    %990 = vmatprep.subr.mxu0 0.0
    %991 = vmatpush1.msra.mxu0 0.0
    %992 = vmatprep.subr.mxu0 0.0
    %993 = vmatpush1.msra.mxu0 0.0
    %994 = vmatprep.subr.mxu0 0.0
    %995 = vmatpush1.msra.mxu0 0.0
    %996 = vmatprep.subr.mxu0 0.0
    %997 = vmatpush1.msra.mxu0 0.0
    %998 = vmatprep.subr.mxu0 0.0
    %999 = vmatpush1.msra.mxu0 %v961
    %1000 = vmatprep.subr.mxu0 0.0
    %1001 = vmatpush1.msra.mxu0 %v960
    %1002 = vmatprep.subr.mxu0 0.0
    %1003 = vmatpush1.msra.mxu0 %v959
    %1004 = vmatprep.subr.mxu0 0.0
    %1005 = vmatpush1.msra.mxu0 %v958
    %1006 = vmatprep.subr.mxu0 0.0
    %1007 = vmatpush2.msra.mxu0 0.0
    %1008 = vmatprep.subr.mxu0 0.0
    %1009 = vmatpush2.msra.mxu0 0.0
    %1010 = vmatprep.subr.mxu0 0.0
    %1011 = vmatpush2.msra.mxu0 0.0
    %1012 = vmatprep.subr.mxu0 0.0
    %1013 = vmatpush2.msra.mxu0 0.0
    %1014 = vmatprep.subr.mxu0 0.0
    %1015 = vmatpush2.msra.mxu0 0.0
    %1016 = vmatprep.subr.mxu0 0.0
    %1017 = vmatpush2.msra.mxu0 0.0
    %1018 = vmatprep.subr.mxu0 0.0
    %1019 = vmatpush2.msra.mxu0 0.0
    %1020 = vmatprep.subr.mxu0 0.0
    %1021 = vmatpush2.msra.mxu0 0.0
    %1022 = vmatprep.subr.mxu0 0.0
    %1023 = vmatpush2.msra.mxu0 0.0
    %1024 = vmatprep.subr.mxu0 0.0
    %1025 = vmatpush2.msra.mxu0 0.0
    %1026 = vmatprep.subr.mxu0 0.0
    %1027 = vmatpush2.msra.mxu0 0.0
    %1028 = vmatprep.subr.mxu0 0.0
    %1029 = vmatpush2.msra.mxu0 0.0
    %1030 = vmatprep.subr.mxu0 0.0
    %1031 = vmatpush2.msra.mxu0 0.0
    %1032 = vmatprep.subr.mxu0 0.0
    %1033 = vmatpush2.msra.mxu0 0.0
    %1034 = vmatprep.subr.mxu0 0.0
    %1035 = vmatpush2.msra.mxu0 0.0
    %1036 = vmatprep.subr.mxu0 0.0
    %1037 = vmatpush2.msra.mxu0 0.0
    %1038 = vmatprep.mubr.f32.mxu0 0.0
    %1039 = vmatmul.mubr.f32.gmra.mxu0 %v972
    %v1040 = vpop.f32.mrf.mxu0
    %v1041 = vadd.f32 %v967, %v1040
    %v1042 = vpop.f32.mrf.mxu0
    %1043 = vdwg.mxu0
    %v1044 = vmul.f32 %v1041, 0.5
    %v1045 = vtanh.pop %v1044
    %v1046 = vmul.f32 %v1045, 0.5
    %v1047 = vadd.f32 %v1046, 0.5
    %vm1048 = vcmask 64512
    %1049 = vst.msk [vmem:[#allocation2] sm:$0xff] %vm1048, %v1047
    // Predicated region
    $region26: #{teacher_model_forward.1} parent=1 // pred_check
      _
    $region27: #{teacher_model_forward.1} parent=1 // pred_check_branch
      %1051 = sbr.rel (0) target = $region29
    $region28: #{teacher_model_forward.1} parent=1 // pred_region
      %s1053 = ssub.s32 128, 128
      %1054 = vsyncadd [#allocation3], %s1053
      %s1056 = sshll.u32 [#allocation2], 4
      %s1057 = int_to_ptr.vmem [resolvable:$true] %s1056
      %1059 = dma.vmem_to_hbm [thread:$0]  %s1057, 128, %s6, [#allocation3]
    $region29: #{teacher_model_forward.1} parent=1 // pred_fallthru
      _
    // Predicated region
    $region30: #{teacher_model_forward.1} parent=1 // pred_check
      _
    $region31: #{teacher_model_forward.1} parent=1 // pred_check_branch
      %1061 = sbr.rel (0) target = $region33
    $region32: #{teacher_model_forward.1} parent=1 // pred_region
      %1062 = dma.done [#allocation3], 128
    $region33: #{teacher_model_forward.1} parent=1 // pred_fallthru
      _
    %1063 = vsyncpa [#allocation3], 1

</llo_original>
